<compile_context>
chip_gen: v5e
topology: v5e:2x2
jax: 0.10.0
libtpu: 0.0.40
codegen_flags: <defaults>
</compile_context>

<pallas_src>
import math
from functools import partial

import jax
import jax.numpy as jnp
from jax.experimental import pallas as pl
from jax.experimental.pallas import tpu as pltpu

_LANE = 128
_SUBLANE = 8
_BIAS_ROWS = 16          # multiple of 16 keeps bf16 sublane packing aligned
_MAX_BATCH_TILE = 2048   # rows per grid step; amortizes ~0.35us/step overhead


def _round_up(x, m):
    return (x + m - 1) // m * m


def _actor_kernel(layer_meta, x_ref, p_ref, o_ref):
    """Fused MLP: relu on hidden layers, tanh on the last layer.

    x_ref: (TB, state_size)   f32 batch tile (lane dim = true state width).
    p_ref: (rows, width)      packed weight/bias slab, whole-array resident in
                              VMEM (single buffered), bf16 or f32.
    o_ref: (TB, pad_out_last) f32 lane-dense output tile.
    """
    x = x_ref[...]
    mx_dtype = p_ref.dtype
    for row_off, reserved, k, pad_out, is_last in layer_meta:
        # Static, tile-aligned slices of the packed parameter slab.
        w = p_ref[row_off:row_off + k, :pad_out]
        b = p_ref[row_off + reserved:row_off + reserved + 1, :pad_out]
        # MXU matmul in the slab dtype (bf16 by default), f32 accumulation.
        y = jnp.dot(x.astype(mx_dtype), w, preferred_element_type=jnp.float32)
        y = y + b.astype(jnp.float32)
        # Zero-padded W columns / bias entries give y == 0 there, and
        # relu(0) = tanh(0) = 0, so padding stays inert through every layer.
        x = jnp.tanh(y) if is_last else jnp.maximum(y, 0.0)
    o_ref[...] = x


def pack_actor_params(params, weights_dtype=jnp.bfloat16):
    """Pack [(W (in,out), b (1,out)), ...] into one tile-aligned slab + metadata.

    Called ONCE per parameter set (see make_actor_forward), not on the forward
    path.  Layout per layer (rows): `reserved` rows of W (zero padded) followed
    by a 16-row block whose first row holds the bias.  Column extents are
    multiples of 128; row offsets are multiples of 16 (bf16 sublane packing).

    metas[i] = (row_offset, reserved_rows, k_rows, pad_out, is_last)
      k_rows = true state_size for layer 0 (state arrives unpadded),
               lane-padded in_features for later layers.
    """
    n = len(params)
    metas = []
    pad_outs = []
    row = 0
    prev_pad_out = None
    for idx, (w, _) in enumerate(params):
        in_f, out_f = w.shape
        pad_out = _round_up(out_f, _LANE)
        k = in_f if idx == 0 else prev_pad_out
        assert k >= in_f, "layer input width does not match previous layer"
        reserved = _round_up(k, _BIAS_ROWS)
        metas.append((row, reserved, k, pad_out, idx == n - 1))
        pad_outs.append(pad_out)
        row += reserved + _BIAS_ROWS
        prev_pad_out = pad_out
    width = max(pad_outs)

    buf = jnp.zeros((row, width), weights_dtype)
    for (w, b), (row_off, reserved, _, _, _) in zip(params, metas):
        w = jnp.asarray(w, jnp.float32)
        b = jnp.asarray(b, jnp.float32).reshape(-1)
        buf = buf.at[row_off:row_off + w.shape[0],
                     :w.shape[1]].set(w.astype(weights_dtype))
        buf = buf.at[row_off + reserved,
                     :b.shape[0]].set(b.astype(weights_dtype))
    return buf, tuple(metas)


def _choose_batch_tile(batch):
    padded = _round_up(batch, _SUBLANE)
    # >= 2 grid steps whenever the batch allows it so the "parallel" batch axis
    # shards across v7x's 2 TensorCores (neutral on v5e/v6e); cap the tile so
    # per-step overhead is amortized on huge batches without the old 512-row
    # over-conservatism.
    tile = _round_up(max(1, -(-padded // 2)), _SUBLANE)
    return max(_SUBLANE, min(tile, _MAX_BATCH_TILE))


@partial(jax.jit, static_argnames=("metas", "action_size", "batch_tile"))
def _actor_forward_impl(state, param_buf, *, metas, action_size, batch_tile):
    batch, state_size = state.shape
    assert state_size == metas[0][2], "state width does not match packed params"
    state = state.astype(jnp.float32)

    tile = _choose_batch_tile(batch) if batch_tile is None \
        else max(_SUBLANE, _round_up(batch_tile, _SUBLANE))
    padded_batch = _round_up(batch, tile)
    if padded_batch != batch:
        state = jnp.pad(state, ((0, padded_batch - batch), (0, 0)))

    pad_out_last = metas[-1][3]
    grid = (padded_batch // tile,)

    # Cost estimate from the padded dims the kernel actually computes.
    flops = 2 * padded_batch * sum(k * po for _, _, k, po, _ in metas)
    cost = pl.CostEstimate(
        flops=flops,
        transcendentals=padded_batch * pad_out_last,
        bytes_accessed=(4 * padded_batch * (state_size + pad_out_last)
                        + param_buf.size * param_buf.dtype.itemsize),
    )

    out = pl.pallas_call(
        partial(_actor_kernel, metas),
        out_shape=jax.ShapeDtypeStruct((padded_batch, pad_out_last), jnp.float32),
        grid=grid,
        in_specs=[
            # Batch-tiled activations; last dim == full array dim (legal even
            # though < 128) -> no 8x lane-padded copy of the state in HBM.
            pl.BlockSpec((tile, state_size), lambda i: (i, 0)),
            # Whole parameter slab resident in VMEM, single-buffered.
            pl.BlockSpec(memory_space=pltpu.MemorySpace.VMEM),
        ],
        out_specs=pl.BlockSpec((tile, pad_out_last), lambda i: (i, 0)),
        compiler_params=pltpu.CompilerParams(
            dimension_semantics=("parallel",)),
        cost_estimate=cost,
    )(state, param_buf)

    # Strip batch + lane padding (padded rows are NOT zero; never expose them).
    return out[:batch, :action_size]


def make_actor_forward(params, *, weights_dtype=jnp.bfloat16, batch_tile=None):
    """Pack parameters once and return a jitted `state -> action` callable."""
    param_buf, metas = pack_actor_params(params, weights_dtype)
    action_size = params[-1][0].shape[1]

    def forward(state):
        return _actor_forward_impl(state, param_buf, metas=metas,
                                   action_size=action_size,
                                   batch_tile=batch_tile)

    return forward


def init_actor_params(key, state_size, action_size, hidden_sizes):
    """Deterministic init matching nn.Linear's default U(-1/sqrt(fan_in), ...)."""
    # TODO(synk): torch.manual_seed RNG stream itself is not reproduced here.
    sizes = [state_size] + list(hidden_sizes) + [action_size]
    params = []
    for fan_in, fan_out in zip(sizes[:-1], sizes[1:]):
        key, kw, kb = jax.random.split(key, 3)
        bound = 1.0 / math.sqrt(fan_in)
        w = jax.random.uniform(kw, (fan_in, fan_out), jnp.float32, -bound, bound)
        b = jax.random.uniform(kb, (1, fan_out), jnp.float32, -bound, bound)
        params.append((w, b))
    return params


def actor_reference(state, params, matmul_dtype=jnp.float32):
    """Pure-JAX reference.  matmul_dtype=bf16 emulates the kernel's MXU path."""
    x = state.astype(jnp.float32)
    for i, (w, b) in enumerate(params):
        y = jnp.dot(x.astype(matmul_dtype), w.astype(matmul_dtype),
                    preferred_element_type=jnp.float32)
        y = y + b.astype(jnp.float32)
        x = jnp.maximum(y, 0.0) if i < len(params) - 1 else jnp.tanh(y)
    return x


if __name__ == "__main__":
    batch = 8
    state_size = 16
    action_size = 4
    hidden_sizes = [32, 32]

    key = jax.random.PRNGKey(0)
    k_state, k_params = jax.random.split(key)

    state = jax.random.normal(k_state, (batch, state_size), jnp.float32)
    params = init_actor_params(k_params, state_size, action_size, hidden_sizes)

    forward = make_actor_forward(params)          # packs once, returns jitted fn
    out = jax.block_until_ready(forward(state))

    # bf16-weight path: compare against a reference with the same weight /
    # activation quantization (both accumulate in f32), plus an f32 sanity check.
    ref_bf16 = actor_reference(state, params, matmul_dtype=jnp.bfloat16)
    ref_f32 = actor_reference(state, params, matmul_dtype=jnp.float32)
    assert out.shape == (batch, action_size)
    assert jnp.allclose(out, ref_bf16, atol=1e-2, rtol=1e-2), "mismatch vs bf16 ref"
    assert jnp.allclose(out, ref_f32, atol=5e-2, rtol=5e-2), "mismatch vs f32 ref"

    print("KERNEL_OK")
</pallas_src>

<mosaic_0001>
module attributes {stable_mosaic.version = 11 : i64} {
  func.func @_actor_kernel(%arg0: i32, %arg1: memref<8x16xf32, #tpu.memory_space<vmem>>, %arg2: memref<320x128xbf16, #tpu.memory_space<vmem>>, %arg3: memref<8x128xf32, #tpu.memory_space<vmem>>) attributes {dimension_semantics = [#tpu.dimension_semantics<parallel>], iteration_bounds = array<i64: 1>, scalar_prefetch = 0 : i64, scratch_operands = 0 : i64, tpu.core_type = #tpu.core_type<tc>, window_params = [{transform_indices = @transform_0, window_bounds = array<i64: 8, 16>}, {pipeline_mode = #tpu.pipeline_mode<synchronous>, transform_indices = @transform_1, window_bounds = array<i64: 320, 128>}, {transform_indices = @transform_2, window_bounds = array<i64: 8, 128>}]} {
    %c0 = arith.constant 0 : index
    %c0_0 = arith.constant 0 : index
    %0 = vector.load %arg1[%c0, %c0_0] : memref<8x16xf32, #tpu.memory_space<vmem>>, vector<8x16xf32>
    %c0_1 = arith.constant 0 : index
    %c0_2 = arith.constant 0 : index
    %1 = vector.load %arg2[%c0_1, %c0_2] : memref<320x128xbf16, #tpu.memory_space<vmem>>, vector<16x128xbf16>
    %c16 = arith.constant 16 : index
    %c0_3 = arith.constant 0 : index
    %2 = vector.load %arg2[%c16, %c0_3] : memref<320x128xbf16, #tpu.memory_space<vmem>>, vector<1x128xbf16>
    %3 = arith.truncf %0 : vector<8x16xf32> to vector<8x16xbf16>
    %cst = arith.constant dense<0.000000e+00> : vector<8x128xf32>
    %4 = tpu.matmul %3, %1, %cst {dimension_numbers = #tpu.dot_dimension_numbers<[1], [0], [0], [1], [0, 0, 1, 1], [], []>} : vector<8x16xbf16>, vector<16x128xbf16>, vector<8x128xf32> -> vector<8x128xf32>
    %5 = arith.extf %2 : vector<1x128xbf16> to vector<1x128xf32>
    %6 = vector.broadcast %5 : vector<1x128xf32> to vector<8x128xf32>
    %7 = arith.addf %4, %6 : vector<8x128xf32>
    %cst_4 = arith.constant 0.000000e+00 : f32
    %8 = vector.broadcast %cst_4 : f32 to vector<8x128xf32>
    %9 = arith.maximumf %7, %8 : vector<8x128xf32>
    %c32 = arith.constant 32 : index
    %c0_5 = arith.constant 0 : index
    %10 = vector.load %arg2[%c32, %c0_5] : memref<320x128xbf16, #tpu.memory_space<vmem>>, vector<128x128xbf16>
    %c160 = arith.constant 160 : index
    %c0_6 = arith.constant 0 : index
    %11 = vector.load %arg2[%c160, %c0_6] : memref<320x128xbf16, #tpu.memory_space<vmem>>, vector<1x128xbf16>
    %12 = arith.truncf %9 : vector<8x128xf32> to vector<8x128xbf16>
    %cst_7 = arith.constant dense<0.000000e+00> : vector<8x128xf32>
    %13 = tpu.matmul %12, %10, %cst_7 {dimension_numbers = #tpu.dot_dimension_numbers<[1], [0], [0], [1], [0, 0, 1, 1], [], []>} : vector<8x128xbf16>, vector<128x128xbf16>, vector<8x128xf32> -> vector<8x128xf32>
    %14 = arith.extf %11 : vector<1x128xbf16> to vector<1x128xf32>
    %15 = vector.broadcast %14 : vector<1x128xf32> to vector<8x128xf32>
    %16 = arith.addf %13, %15 : vector<8x128xf32>
    %cst_8 = arith.constant 0.000000e+00 : f32
    %17 = vector.broadcast %cst_8 : f32 to vector<8x128xf32>
    %18 = arith.maximumf %16, %17 : vector<8x128xf32>
    %c176 = arith.constant 176 : index
    %c0_9 = arith.constant 0 : index
    %19 = vector.load %arg2[%c176, %c0_9] : memref<320x128xbf16, #tpu.memory_space<vmem>>, vector<128x128xbf16>
    %c304 = arith.constant 304 : index
    %c0_10 = arith.constant 0 : index
    %20 = vector.load %arg2[%c304, %c0_10] : memref<320x128xbf16, #tpu.memory_space<vmem>>, vector<1x128xbf16>
    %21 = arith.truncf %18 : vector<8x128xf32> to vector<8x128xbf16>
    %cst_11 = arith.constant dense<0.000000e+00> : vector<8x128xf32>
    %22 = tpu.matmul %21, %19, %cst_11 {dimension_numbers = #tpu.dot_dimension_numbers<[1], [0], [0], [1], [0, 0, 1, 1], [], []>} : vector<8x128xbf16>, vector<128x128xbf16>, vector<8x128xf32> -> vector<8x128xf32>
    %23 = arith.extf %20 : vector<1x128xbf16> to vector<1x128xf32>
    %24 = vector.broadcast %23 : vector<1x128xf32> to vector<8x128xf32>
    %25 = arith.addf %22, %24 : vector<8x128xf32>
    %26 = math.tanh %25 : vector<8x128xf32>
    %c0_12 = arith.constant 0 : index
    %c0_13 = arith.constant 0 : index
    %27 = vector.load %arg3[%c0_12, %c0_13] : memref<8x128xf32, #tpu.memory_space<vmem>>, vector<8x128xf32>
    tpu.vector_store %arg3[%c0_12, %c0_13], %26 {strides = array<i32>} : memref<8x128xf32, #tpu.memory_space<vmem>>, vector<8x128xf32>,
    return
  }
  func.func @transform_0(%arg0: i32) -> (i32, i32) {
    %c0_i32 = arith.constant 0 : i32
    %c0_i32_0 = arith.constant 0 : i32
    return %arg0, %c0_i32 : i32, i32
  }
  func.func @transform_1(%arg0: i32) -> (i32, i32) {
    %c0_i32 = arith.constant 0 : i32
    %c0_i32_0 = arith.constant 0 : i32
    %c0_i32_1 = arith.constant 0 : i32
    return %c0_i32, %c0_i32_0 : i32, i32
  }
  func.func @transform_2(%arg0: i32) -> (i32, i32) {
    %c0_i32 = arith.constant 0 : i32
    %c0_i32_0 = arith.constant 0 : i32
    return %arg0, %c0_i32 : i32, i32
  }
}

</mosaic_0001>

<llo_original>
// kernel: _actor_forward_impl.1
$region0: #{_actor_forward_impl.1}
  #allocation0 [shape = 'u32[]', space=smem, size = 0x4, offset = 0x4, fixed_abs, tag = 'smem constant byte address 0x4 - core index']
  #allocation1 [shape = 'u32[72,128]{1,0:T(1,128)}', space=vmem, size = 0x9000, scoped, tag = 'internal scratch']
  %s0 = inlined_call_operand.hbm [shape: f32[8,16], index: 0, kind: input, shape index: {}]
  %s1 = inlined_call_operand.hbm [shape: bf16[320,128], index: 1, kind: input, shape index: {}]
  %s2 = inlined_call_operand.vmem [shape: f32[8,128], index: 2, kind: output, shape index: {}]
  %s3 = sld [smem:[#allocation0]]
  $region26: #{_actor_forward_impl.1} parent=0
    _
  %s5 = ssub.s32 1, %s3
  %s6 = scalar_select 0, %s5, %s3
  $region1: #{_actor_forward_impl.1} parent=0
    #allocation2 [shape = 'u8[4096]{0}', space=vmem, size = 0x1000, scoped, tag = 'input window, operand 0, single buffered']
    #allocation3 [shape = 's32[1]{0}', space=sflag, size = 0x4, scoped, tag = 'scoped memory for _actor_forward_impl.1']
    #allocation4 [shape = 'u8[81920]{0}', space=vmem, size = 0x14000, scoped, tag = 'input window, operand 1, single buffered']
    #allocation5 [shape = 's32[1]{0}', space=sflag, size = 0x4, scoped, tag = 'scoped memory for _actor_forward_impl.1']
    %7 = vsyncpa [#allocation3], 0
    %8 = vsyncpa [#allocation5], 0
    // Predicated region
    $region2: #{_actor_forward_impl.1} parent=1 // pred_check
      _
    $region3: #{_actor_forward_impl.1} parent=1 // pred_check_branch
      %10 = sbr.rel (0) target = $region5
    $region4: #{_actor_forward_impl.1} parent=1 // pred_region
      %12 = vsyncadd [#allocation3], 0
      %s14 = sshll.u32 %s0, 4
      %s15 = int_to_ptr.hbm [resolvable:$true] %s14
      %s16 = sshll.u32 [#allocation2], 4
      %s17 = int_to_ptr.vmem [resolvable:$true] %s16
      %19 = dma.hbm_to_vmem [thread:$0]  %s15, 128, %s17, [#allocation3]
    $region5: #{_actor_forward_impl.1} parent=1 // pred_fallthru
      _
    // Predicated region
    $region6: #{_actor_forward_impl.1} parent=1 // pred_check
      _
    $region7: #{_actor_forward_impl.1} parent=1 // pred_check_branch
      %21 = sbr.rel (0) target = $region9
    $region8: #{_actor_forward_impl.1} parent=1 // pred_region
      %23 = vsyncadd [#allocation5], 0
      %s24 = sshll.u32 %s1, 4
      %s25 = int_to_ptr.hbm [resolvable:$true] %s24
      %s26 = sshll.u32 [#allocation4], 4
      %s27 = int_to_ptr.vmem [resolvable:$true] %s26
      %32 = dma.hbm_to_vmem [thread:$0]  %s25, 2560, %s27, [#allocation5], 64, 64, 4
    $region9: #{_actor_forward_impl.1} parent=1 // pred_fallthru
      _
    // Predicated region
    $region10: #{_actor_forward_impl.1} parent=1 // pred_check
      _
    $region11: #{_actor_forward_impl.1} parent=1 // pred_check_branch
      %34 = sbr.rel (0) target = $region13
    $region12: #{_actor_forward_impl.1} parent=1 // pred_region
      %36 = dma.done [#allocation3], 128
    $region13: #{_actor_forward_impl.1} parent=1 // pred_fallthru
      _
    // Predicated region
    $region14: #{_actor_forward_impl.1} parent=1 // pred_check
      _
    $region15: #{_actor_forward_impl.1} parent=1 // pred_check_branch
      %38 = sbr.rel (0) target = $region17
    $region16: #{_actor_forward_impl.1} parent=1 // pred_region
      %40 = dma.done [#allocation5], 2560
    $region17: #{_actor_forward_impl.1} parent=1 // pred_fallthru
      _
    %v42 = vld [vmem:[#allocation2] sm:$0xff]
    %v43 = vld [vmem:[#allocation4] sm:$0xf]
    %v44 = vld [vmem:[#allocation4 + $0x4] sm:$0xf]
    %v45 = vld [vmem:[#allocation4 + $0x8] sm:$0x1]
    %v46 = vpack.c.bf16 %v42, %v42
    %v47 = vunpack.c.l.bf16 %v45
    %v48 = vperm.slane %v47, 0
    %v51 = vunpack.c.l.b16 %v43
    %v52 = vunpack.c.l.b16 %v44
    %v53 = vpack.c.b16 %v52, %v51
    %vm55 = vcmask 130048
    %v57 = vsel %vm55, %v46, 0
    %59 = vmatpush.bf16.msra.mxu0 0
    %60 = vmatpush.bf16.msra.mxu0 0
    %61 = vmatpush.bf16.msra.mxu0 0
    %62 = vmatpush.bf16.msra.mxu0 0
    %63 = vmatpush.bf16.msra.mxu0 0
    %64 = vmatpush.bf16.msra.mxu0 0
    %65 = vmatpush.bf16.msra.mxu0 0
    %66 = vmatpush.bf16.msra.mxu0 %v53
    %67 = vmatmul.bf16.gmra.mxu0 %v57
    %v68 = vpop.f32.mrf.mxu0
    %v69 = vadd.f32 %v48, %v68
    %v70 = vpop.f32.mrf.mxu0
    %71 = vdwg.mxu0
    %v72 = vmax.f32 %v69, 0.0
    %v73 = vld [vmem:[#allocation4 + $0x10] sm:$0xf]
    %v74 = vld [vmem:[#allocation4 + $0x14] sm:$0xf]
    %v75 = vld [vmem:[#allocation4 + $0x18] sm:$0xf]
    %v76 = vld [vmem:[#allocation4 + $0x1c] sm:$0xf]
    %v77 = vld [vmem:[#allocation4 + $0x20] sm:$0xf]
    %v78 = vld [vmem:[#allocation4 + $0x24] sm:$0xf]
    %v79 = vld [vmem:[#allocation4 + $0x28] sm:$0xf]
    %v80 = vld [vmem:[#allocation4 + $0x2c] sm:$0xf]
    %v81 = vld [vmem:[#allocation4 + $0x30] sm:$0xf]
    %v82 = vld [vmem:[#allocation4 + $0x34] sm:$0xf]
    %v83 = vld [vmem:[#allocation4 + $0x38] sm:$0xf]
    %v84 = vld [vmem:[#allocation4 + $0x3c] sm:$0xf]
    %v85 = vld [vmem:[#allocation4 + $0x40] sm:$0xf]
    %v86 = vld [vmem:[#allocation4 + $0x44] sm:$0xf]
    %v87 = vld [vmem:[#allocation4 + $0x48] sm:$0xf]
    %v88 = vld [vmem:[#allocation4 + $0x4c] sm:$0xf]
    %v89 = vld [vmem:[#allocation4 + $0x50] sm:$0x1]
    %v90 = vpack.c.bf16 %v72, %v72
    %v91 = vunpack.c.l.bf16 %v89
    %v92 = vperm.slane %v91, 0
    %v109 = vunpack.c.l.b16 %v73
    %v110 = vunpack.c.l.b16 %v74
    %v111 = vunpack.c.l.b16 %v75
    %v112 = vunpack.c.l.b16 %v76
    %v113 = vunpack.c.l.b16 %v77
    %v114 = vunpack.c.l.b16 %v78
    %v115 = vunpack.c.l.b16 %v79
    %v116 = vunpack.c.l.b16 %v80
    %v117 = vunpack.c.l.b16 %v81
    %v118 = vunpack.c.l.b16 %v82
    %v119 = vunpack.c.l.b16 %v83
    %v120 = vunpack.c.l.b16 %v84
    %v121 = vunpack.c.l.b16 %v85
    %v122 = vunpack.c.l.b16 %v86
    %v123 = vunpack.c.l.b16 %v87
    %v124 = vunpack.c.l.b16 %v88
    %v125 = vpack.c.b16 %v110, %v109
    %v126 = vpack.c.b16 %v112, %v111
    %v127 = vpack.c.b16 %v114, %v113
    %v128 = vpack.c.b16 %v116, %v115
    %v129 = vpack.c.b16 %v118, %v117
    %v130 = vpack.c.b16 %v120, %v119
    %v131 = vpack.c.b16 %v122, %v121
    %v132 = vpack.c.b16 %v124, %v123
    %141 = vmatpush.bf16.msra.mxu0 %v132
    %142 = vmatpush.bf16.msra.mxu0 %v131
    %143 = vmatpush.bf16.msra.mxu0 %v130
    %144 = vmatpush.bf16.msra.mxu0 %v129
    %145 = vmatpush.bf16.msra.mxu0 %v128
    %146 = vmatpush.bf16.msra.mxu0 %v127
    %147 = vmatpush.bf16.msra.mxu0 %v126
    %148 = vmatpush.bf16.msra.mxu0 %v125
    %149 = vmatmul.bf16.gmra.mxu0 %v90
    %v150 = vpop.f32.mrf.mxu0
    %v151 = vadd.f32 %v92, %v150
    %v152 = vpop.f32.mrf.mxu0
    %153 = vdwg.mxu0
    %v154 = vmax.f32 %v151, 0.0
    %v155 = vld [vmem:[#allocation4 + $0x58] sm:$0xf]
    %v156 = vld [vmem:[#allocation4 + $0x5c] sm:$0xf]
    %v157 = vld [vmem:[#allocation4 + $0x60] sm:$0xf]
    %v158 = vld [vmem:[#allocation4 + $0x64] sm:$0xf]
    %v159 = vld [vmem:[#allocation4 + $0x68] sm:$0xf]
    %v160 = vld [vmem:[#allocation4 + $0x6c] sm:$0xf]
    %v161 = vld [vmem:[#allocation4 + $0x70] sm:$0xf]
    %v162 = vld [vmem:[#allocation4 + $0x74] sm:$0xf]
    %v163 = vld [vmem:[#allocation4 + $0x78] sm:$0xf]
    %v164 = vld [vmem:[#allocation4 + $0x7c] sm:$0xf]
    %v165 = vld [vmem:[#allocation4 + $0x80] sm:$0xf]
    %v166 = vld [vmem:[#allocation4 + $0x84] sm:$0xf]
    %v167 = vld [vmem:[#allocation4 + $0x88] sm:$0xf]
    %v168 = vld [vmem:[#allocation4 + $0x8c] sm:$0xf]
    %v169 = vld [vmem:[#allocation4 + $0x90] sm:$0xf]
    %v170 = vld [vmem:[#allocation4 + $0x94] sm:$0xf]
    %v171 = vld [vmem:[#allocation4 + $0x98] sm:$0x1]
    %v172 = vpack.c.bf16 %v154, %v154
    %v173 = vunpack.c.l.bf16 %v171
    %v174 = vperm.slane %v173, 0
    %v191 = vunpack.c.l.b16 %v155
    %v192 = vunpack.c.l.b16 %v156
    %v193 = vunpack.c.l.b16 %v157
    %v194 = vunpack.c.l.b16 %v158
    %v195 = vunpack.c.l.b16 %v159
    %v196 = vunpack.c.l.b16 %v160
    %v197 = vunpack.c.l.b16 %v161
    %v198 = vunpack.c.l.b16 %v162
    %v199 = vunpack.c.l.b16 %v163
    %v200 = vunpack.c.l.b16 %v164
    %v201 = vunpack.c.l.b16 %v165
    %v202 = vunpack.c.l.b16 %v166
    %v203 = vunpack.c.l.b16 %v167
    %v204 = vunpack.c.l.b16 %v168
    %v205 = vunpack.c.l.b16 %v169
    %v206 = vunpack.c.l.b16 %v170
    %v207 = vpack.c.b16 %v192, %v191
    %v208 = vpack.c.b16 %v194, %v193
    %v209 = vpack.c.b16 %v196, %v195
    %v210 = vpack.c.b16 %v198, %v197
    %v211 = vpack.c.b16 %v200, %v199
    %v212 = vpack.c.b16 %v202, %v201
    %v213 = vpack.c.b16 %v204, %v203
    %v214 = vpack.c.b16 %v206, %v205
    %223 = vmatpush.bf16.msra.mxu0 %v214
    %224 = vmatpush.bf16.msra.mxu0 %v213
    %225 = vmatpush.bf16.msra.mxu0 %v212
    %226 = vmatpush.bf16.msra.mxu0 %v211
    %227 = vmatpush.bf16.msra.mxu0 %v210
    %228 = vmatpush.bf16.msra.mxu0 %v209
    %229 = vmatpush.bf16.msra.mxu0 %v208
    %230 = vmatpush.bf16.msra.mxu0 %v207
    %231 = vmatmul.bf16.gmra.mxu0 %v172
    %v232 = vpop.f32.mrf.mxu0
    %v233 = vadd.f32 %v174, %v232
    %v234 = vpop.f32.mrf.mxu0
    %235 = vdwg.mxu0
    %v236 = vtanh.pop %v233
    %237 = vst [vmem:[%s2] sm:$0xff] %v236
    // Predicated region
    $region18: #{_actor_forward_impl.1} parent=1 // pred_check
      _
    $region19: #{_actor_forward_impl.1} parent=1 // pred_check_branch
      %239 = sbr.rel (0) target = $region21
    $region20: #{_actor_forward_impl.1} parent=1 // pred_region
      _
    $region21: #{_actor_forward_impl.1} parent=1 // pred_fallthru
      _
    // Predicated region
    $region22: #{_actor_forward_impl.1} parent=1 // pred_check
      _
    $region23: #{_actor_forward_impl.1} parent=1 // pred_check_branch
      %241 = sbr.rel (0) target = $region25
    $region24: #{_actor_forward_impl.1} parent=1 // pred_region
      _
    $region25: #{_actor_forward_impl.1} parent=1 // pred_fallthru
      _
    %242 = vsyncpa [#allocation3], 1
    %243 = vsyncpa [#allocation5], 1

</llo_original>
